<compile_context>
chip_gen: v7x
topology: tpu7x:2x2x1
jax: 0.10.0
libtpu: 0.0.40
codegen_flags: <defaults>
</compile_context>

<pallas_src>
import functools

import jax
import jax.numpy as jnp
from jax.experimental import pallas as pl
from jax.experimental.pallas import tpu as pltpu


def _round_up(x, m):
    return (x + m - 1) // m * m


def _patch_embed_kernel_fastk(x_ref, w_ref, pb_ref, o_ref):
    # Single K tile: one MXU pass, bias/pos add, store.  No scratch traffic.
    o_ref[...] = (jnp.dot(x_ref[...], w_ref[...],
                          preferred_element_type=jnp.float32)
                  + pb_ref[...]).astype(o_ref.dtype)


def _patch_embed_kernel_acc(x_ref, w_ref, pb_ref, o_ref, acc_ref):
    # x_ref:   (tm, tk)  bf16 patch rows
    # w_ref:   (tk, tn)  bf16 embedding weight
    # pb_ref:  (tm, tn)  f32  pos-embedding + conv bias (pre-folded)
    # o_ref:   (tm, tn)  output tile
    # acc_ref: (tm, tn)  f32  K-reduction accumulator (VMEM scratch)
    @pl.when(pl.program_id(2) == 0)
    def _():
        acc_ref[...] = jnp.zeros_like(acc_ref)

    acc_ref[...] += jnp.dot(x_ref[...], w_ref[...],
                            preferred_element_type=jnp.float32)

    @pl.when(pl.program_id(2) == pl.num_programs(2) - 1)
    def _():
        o_ref[...] = (acc_ref[...] + pb_ref[...]).astype(o_ref.dtype)


def patch_embedding_block(x, conv_w, conv_b, pos_emb, patch_size):
    """x: (B, C, D, H, W) float32.  Returns (B, num_patches, emb_dim)."""
    B, C, D, H, W = x.shape
    p = patch_size
    assert D % p == 0 and H % p == 0 and W % p == 0, (
        "spatial dims must be divisible by patch_size")
    emb_dim = conv_w.shape[0]
    gd, gh, gw = D // p, H // p, W // p
    num_patches = gd * gh * gw
    patch_dim = C * p * p * p

    # --- glue (XLA): non-overlapping patch extraction (the Conv3d "im2col").
    # Cast to bf16 *before* the transpose so the materialized intermediate is
    # half the bytes.
    # TODO(synk): fully fuse this gather into the kernel DMA (index_map over
    # (gd, gh, gw)) to avoid one extra HBM round-trip; the in-kernel
    # (C,p,p,p)->(patch_dim,) rearrange would need XLU transposes, so it is
    # left to XLA for now.
    xp = x.astype(jnp.bfloat16).reshape(B, C, gd, p, gh, p, gw, p)
    xp = xp.transpose(0, 2, 4, 6, 1, 3, 5, 7)        # (B, gd, gh, gw, C, p, p, p)
    patches = xp.reshape(B, num_patches, patch_dim)

    # Padded sizes: lane-dense N (mult of 128), (8,128)-aligned M-per-batch / K.
    np_pad = _round_up(num_patches, 8)
    k_pad = _round_up(patch_dim, 128)
    n_pad = _round_up(emb_dim, 128)

    if np_pad != num_patches or k_pad != patch_dim:
        patches = jnp.pad(patches, ((0, 0), (0, np_pad - num_patches),
                                    (0, k_pad - patch_dim)))
    m_total = B * np_pad
    patches = patches.reshape(m_total, k_pad)          # flattened M axis, bf16

    w_mat = conv_w.reshape(emb_dim, patch_dim).T.astype(jnp.bfloat16)
    if k_pad != patch_dim or n_pad != emb_dim:
        w_mat = jnp.pad(w_mat, ((0, k_pad - patch_dim), (0, n_pad - emb_dim)))

    # Fold conv bias into the f32 positional embedding (one operand fewer).
    posb = (pos_emb.reshape(num_patches, emb_dim).astype(jnp.float32)
            + conv_b.astype(jnp.float32)[None, :])
    if np_pad != num_patches or n_pad != emb_dim:
        posb = jnp.pad(posb, ((0, np_pad - num_patches), (0, n_pad - emb_dim)))

    # --- tile selection.  tm divides the per-batch patch count so an M tile
    # never straddles batches and pos/bias indexing is a simple modulo.
    tm = max(t for t in range(8, min(np_pad, 512) + 1, 8) if np_pad % t == 0)
    tn = max(t for t in (512, 256, 128) if n_pad % t == 0)
    tk = max(t for t in (1024, 512, 256, 128) if k_pad % t == 0)
    blocks_per_batch = np_pad // tm
    grid_m = m_total // tm
    grid_n = n_pad // tn
    grid_k = k_pad // tk

    # Rough VMEM budget: double-buffered inputs/output + accumulator, 2x
    # headroom, clamped to v7x's 64 MiB physical VMEM.
    per_step = tm * tk * 2 + tk * tn * 2 + tm * tn * 4 + tm * tn * 4
    vmem_limit = int(min(max(2 * (2 * per_step + tm * tn * 4),
                             32 * 1024 * 1024), 64 * 1024 * 1024))
    cp = pltpu.CompilerParams(
        dimension_semantics=("parallel", "parallel", "arbitrary")[:
                            (2 if grid_k == 1 else 3)],
        vmem_limit_bytes=vmem_limit,
    )

    if grid_k == 1:
        # Fast path: whole K in one tile, 2-D grid, no scratch accumulator.
        out = pl.pallas_call(
            _patch_embed_kernel_fastk,
            out_shape=jax.ShapeDtypeStruct((m_total, n_pad), x.dtype),
            grid_spec=pltpu.PrefetchScalarGridSpec(
                num_scalar_prefetch=0,
                grid=(grid_m, grid_n),
                in_specs=[
                    pl.BlockSpec((tm, tk), lambda i, j: (i, 0)),
                    pl.BlockSpec((tk, tn), lambda i, j: (0, j)),
                    pl.BlockSpec((tm, tn),
                                 lambda i, j: (i % blocks_per_batch, j)),
                ],
                out_specs=pl.BlockSpec((tm, tn), lambda i, j: (i, j)),
            ),
            compiler_params=cp,
        )(patches, w_mat, posb)
    else:
        out = pl.pallas_call(
            _patch_embed_kernel_acc,
            out_shape=jax.ShapeDtypeStruct((m_total, n_pad), x.dtype),
            grid_spec=pltpu.PrefetchScalarGridSpec(
                num_scalar_prefetch=0,
                grid=(grid_m, grid_n, grid_k),
                in_specs=[
                    pl.BlockSpec((tm, tk), lambda i, j, k: (i, k)),
                    pl.BlockSpec((tk, tn), lambda i, j, k: (k, j)),
                    # pos+bias repeats every batch: block index wraps modulo
                    # blocks_per_batch along the flattened M axis; independent
                    # of k so it is not re-fetched across the reduction.
                    pl.BlockSpec((tm, tn),
                                 lambda i, j, k: (i % blocks_per_batch, j)),
                ],
                out_specs=pl.BlockSpec((tm, tn), lambda i, j, k: (i, j)),
                scratch_shapes=[pltpu.VMEM((tm, tn), jnp.float32)],
            ),
            compiler_params=cp,
        )(patches, w_mat, posb)

    # TODO(synk): dropout_rate defaults to 0.0 (identity); non-zero training
    # dropout would need pltpu.prng_random_bits inside the kernel.
    out = out.reshape(B, np_pad, n_pad)[:, :num_patches, :emb_dim]
    return out


def _trunc_normal(key, shape, std=0.02, a=-2.0, b=2.0):
    u = jax.random.truncated_normal(key, a / std, b / std, shape, jnp.float32)
    return u * std


if __name__ == "__main__":
    # Small config: in_channels=4, image_size=16, patch_size=4, emb_dim=32, heads=4
    in_channels, image_size, patch_size, emb_dim, num_heads = 4, 16, 4, 32, 4
    assert image_size % patch_size == 0
    assert emb_dim % num_heads == 0
    grid_side = image_size // patch_size
    num_patches = grid_side ** 3                       # 64
    patch_dim = in_channels * patch_size ** 3          # 256
    B = 2

    key = jax.random.PRNGKey(0)
    kx, kw, kb, kp = jax.random.split(key, 4)

    x = jax.random.normal(
        kx, (B, in_channels, image_size, image_size, image_size), jnp.float32)
    bound = 1.0 / (patch_dim ** 0.5)
    conv_w = jax.random.uniform(kw, (emb_dim, in_channels, patch_size,
                                     patch_size, patch_size),
                                jnp.float32, -bound, bound)
    conv_b = jax.random.uniform(kb, (emb_dim,), jnp.float32, -bound, bound)
    pos_emb = _trunc_normal(kp, (1, num_patches, emb_dim), std=0.02)

    fn = jax.jit(functools.partial(patch_embedding_block, patch_size=patch_size))
    out = fn(x, conv_w, conv_b, pos_emb)
    jax.block_until_ready(out)

    # Pure-JAX reference using the same bf16 input quantization as the kernel
    # (products of bf16 values are exact in f32; only accumulation order
    # differs, so a tight tolerance is valid).
    xq = x.astype(jnp.bfloat16).astype(jnp.float32)
    wq = conv_w.astype(jnp.bfloat16).astype(jnp.float32)
    xp = xq.reshape(B, in_channels, grid_side, patch_size, grid_side, patch_size,
                    grid_side, patch_size)
    xp = xp.transpose(0, 2, 4, 6, 1, 3, 5, 7).reshape(B, num_patches, patch_dim)
    ref = xp @ wq.reshape(emb_dim, patch_dim).T + conv_b[None, None, :] + pos_emb

    assert out.shape == (B, num_patches, emb_dim)
    assert jnp.allclose(out, ref, atol=1e-3, rtol=1e-3), float(
        jnp.max(jnp.abs(out - ref)))

    print("KERNEL_OK")
</pallas_src>

<mosaic_0001>
module attributes {stable_mosaic.version = 11 : i64} {
  func.func @_patch_embed_kernel_fastk(%arg0: i32, %arg1: i32, %arg2: memref<64x256xbf16, #tpu.memory_space<vmem>>, %arg3: memref<256x128xbf16, #tpu.memory_space<vmem>>, %arg4: memref<64x128xf32, #tpu.memory_space<vmem>>, %arg5: memref<64x128xf32, #tpu.memory_space<vmem>>) attributes {dimension_semantics = [#tpu.dimension_semantics<parallel>, #tpu.dimension_semantics<parallel>], iteration_bounds = array<i64: 2, 1>, scalar_prefetch = 0 : i64, scratch_operands = 0 : i64, tpu.core_type = #tpu.core_type<tc>, window_params = [{transform_indices = @transform_0, window_bounds = array<i64: 64, 256>}, {transform_indices = @transform_1, window_bounds = array<i64: 256, 128>}, {transform_indices = @transform_2, window_bounds = array<i64: 64, 128>}, {transform_indices = @transform_3, window_bounds = array<i64: 64, 128>}]} {
    %c0 = arith.constant 0 : index
    %c0_0 = arith.constant 0 : index
    %0 = vector.load %arg2[%c0, %c0_0] : memref<64x256xbf16, #tpu.memory_space<vmem>>, vector<64x256xbf16>
    %c0_1 = arith.constant 0 : index
    %c0_2 = arith.constant 0 : index
    %1 = vector.load %arg3[%c0_1, %c0_2] : memref<256x128xbf16, #tpu.memory_space<vmem>>, vector<256x128xbf16>
    %cst = arith.constant dense<0.000000e+00> : vector<64x128xf32>
    %2 = tpu.matmul %0, %1, %cst {dimension_numbers = #tpu.dot_dimension_numbers<[1], [0], [0], [1], [0, 0, 1, 1], [], []>} : vector<64x256xbf16>, vector<256x128xbf16>, vector<64x128xf32> -> vector<64x128xf32>
    %c0_3 = arith.constant 0 : index
    %c0_4 = arith.constant 0 : index
    %3 = vector.load %arg4[%c0_3, %c0_4] : memref<64x128xf32, #tpu.memory_space<vmem>>, vector<64x128xf32>
    %4 = arith.addf %2, %3 : vector<64x128xf32>
    %c0_5 = arith.constant 0 : index
    %c0_6 = arith.constant 0 : index
    %5 = vector.load %arg5[%c0_5, %c0_6] : memref<64x128xf32, #tpu.memory_space<vmem>>, vector<64x128xf32>
    tpu.vector_store %arg5[%c0_5, %c0_6], %4 {strides = array<i32>} : memref<64x128xf32, #tpu.memory_space<vmem>>, vector<64x128xf32>,
    return
  }
  func.func @transform_0(%arg0: i32, %arg1: i32) -> (i32, i32) {
    %c0_i32 = arith.constant 0 : i32
    %c0_i32_0 = arith.constant 0 : i32
    return %arg0, %c0_i32 : i32, i32
  }
  func.func @transform_1(%arg0: i32, %arg1: i32) -> (i32, i32) {
    %c0_i32 = arith.constant 0 : i32
    %c0_i32_0 = arith.constant 0 : i32
    return %c0_i32, %arg1 : i32, i32
  }
  func.func @transform_2(%arg0: i32, %arg1: i32) -> (i32, i32) {
    %c1_i32 = arith.constant 1 : i32
    %c0_i32 = arith.constant 0 : i32
    %0 = arith.cmpi eq, %c1_i32, %c0_i32 : i32
    %c1_i32_0 = arith.constant 1 : i32
    %1 = arith.select %0, %c1_i32_0, %c1_i32 : i32
    %2 = arith.remsi %arg0, %1 : i32
    %c0_i32_1 = arith.constant 0 : i32
    %3 = arith.cmpi ne, %2, %c0_i32_1 : i32
    %c0_i32_2 = arith.constant 0 : i32
    %4 = arith.cmpi slt, %2, %c0_i32_2 : i32
    %c0_i32_3 = arith.constant 0 : i32
    %5 = arith.cmpi slt, %1, %c0_i32_3 : i32
    %6 = arith.xori %4, %5 : i1
    %7 = arith.andi %6, %3 : i1
    %8 = arith.addi %2, %1 : i32
    %9 = arith.select %7, %8, %2 : i32
    %c0_i32_4 = arith.constant 0 : i32
    return %9, %arg1 : i32, i32
  }
  func.func @transform_3(%arg0: i32, %arg1: i32) -> (i32, i32) {
    %c0_i32 = arith.constant 0 : i32
    return %arg0, %arg1 : i32, i32
  }
}

</mosaic_0001>

<llo_original>
// kernel: patch_embedding_block.1
$region0: #{patch_embedding_block.1}
  #allocation0 [shape = 'u32[]', space=smem, size = 0x4, offset = 0x4, fixed_abs, tag = 'smem constant byte address 0x4 - core index']
  #allocation1 [shape = 'u32[144,128]{1,0:T(1,128)}', space=vmem, size = 0x12000, scoped, tag = 'internal scratch']
  %s0 = inlined_call_operand.vmem [shape: bf16[128,256], index: 0, kind: input, shape index: {}]
  %s1 = inlined_call_operand.vmem [shape: bf16[256,128], index: 1, kind: input, shape index: {}]
  %s2 = inlined_call_operand.vmem [shape: f32[64,128], index: 2, kind: input, shape index: {}]
  %s3 = inlined_call_operand.vmem [shape: f32[128,128], index: 3, kind: output, shape index: {}]
  %s4 = sld [smem:[#allocation0]]
  $region45: #{patch_embedding_block.1} parent=0
    _
  %s6 = ssub.s32 1, %s4
  %s7 = scalar_select 0, %s6, %s4
  loop: start=0, step=1, limit=4
  $region2: #{patch_embedding_block.1} parent=0 // loop_pre_header
    _
  $region3: #{patch_embedding_block.1} parent=0 // loop_header
    %s9 = sphi 0, %s13
    %p10 = scmp.ge.s32.totalorder %s9, 4
    %s16 = sphi 0, %s28
    %s17 = sphi 0, %s24
    %s18 = sphi 0, %s16
    %s19 = sphi 0, %s17
    %s20 = sphi 0, %s18
    %s21 = sphi 0, %s19
    %s31 = sphi 0, %s33
    %s34 = sphi 0, %s31
    %s35 = sphi 0, %s34
    %s51 = sphi 0, %s35
    %s57 = sphi 0, %s59
    %s60 = sphi 0, %s57
    %s61 = sphi 0, %s60
    %s77 = sphi 0, %s61
    %s83 = sphi 0, %s85
    %s86 = sphi 0, %s83
    %s87 = sphi 0, %s86
    %s103 = sphi 0, %s87
    %s111 = sphi 0, %s113
    %s114 = sphi 0, %s111
    %s115 = sphi 0, %s114
    %s131 = sphi 0, %s115
  $region4: #{patch_embedding_block.1} parent=0 // loop_header_branch
    %12 = sbr.rel (%p10) target = $region8
  $region5: #{patch_embedding_block.1} parent=0 // loop_body
    %s14 = ssub.s32 %s9, 1
    %s15 = ssub.s32 %s9, 2
    %s22 = sadd.s32 1, %s17
    %p23 = scmp.ge.s32.totalorder %s22, 1
    %s24 = scalar_select %p23, 0, %s22
    %s25 = sadd.s32 1, %s16
    %s26 = scalar_select %p23, %s25, %s16
    %p27 = scmp.ge.s32.totalorder %s26, 2
    %s28 = scalar_select %p27, 0, %s26
    %s29 = ssub.s32 %s16, %s28
    %p30 = scmp.eq.s32.totalorder %s29, 0
    %s32 = sadd.s32 %s31, 1
    %s33 = scalar_select %p30, %s31, %s32
    %p36 = pneg %p30
    %p37 = scmp.eq.s32.totalorder %s9, 1
    %p38 = por %p36, %p37
    %p39 = scmp.ne.s32.totalorder %s31, %s34
    %p40 = scmp.eq.s32.totalorder %s9, 0
    %p41 = por %p39, %p40
    %p42 = scmp.ne.s32.totalorder %s31, %s34
    %p43 = scmp.eq.s32.totalorder %s14, 1
    %p44 = por %p42, %p43
    %p45 = scmp.ne.s32.totalorder %s34, %s35
    %p46 = scmp.eq.s32.totalorder %s14, 0
    %p47 = por %p45, %p46
    %p48 = scmp.ne.s32.totalorder %s34, %s35
    %p49 = scmp.eq.s32.totalorder %s15, 1
    %p50 = por %p48, %p49
    %p52 = scmp.ne.s32.totalorder %s35, %s51
    %p53 = scmp.eq.s32.totalorder %s15, 0
    %p54 = por %p52, %p53
    %s55 = ssub.s32 %s17, %s24
    %p56 = scmp.eq.s32.totalorder %s55, 0
    %s58 = sadd.s32 %s57, 1
    %s59 = scalar_select %p56, %s57, %s58
    %p62 = pneg %p56
    %p63 = scmp.eq.s32.totalorder %s9, 1
    %p64 = por %p62, %p63
    %p65 = scmp.ne.s32.totalorder %s57, %s60
    %p66 = scmp.eq.s32.totalorder %s9, 0
    %p67 = por %p65, %p66
    %p68 = scmp.ne.s32.totalorder %s57, %s60
    %p69 = scmp.eq.s32.totalorder %s14, 1
    %p70 = por %p68, %p69
    %p71 = scmp.ne.s32.totalorder %s60, %s61
    %p72 = scmp.eq.s32.totalorder %s14, 0
    %p73 = por %p71, %p72
    %p74 = scmp.ne.s32.totalorder %s60, %s61
    %p75 = scmp.eq.s32.totalorder %s15, 1
    %p76 = por %p74, %p75
    %p78 = scmp.ne.s32.totalorder %s61, %s77
    %p79 = scmp.eq.s32.totalorder %s15, 0
    %p80 = por %p78, %p79
    %s81 = ssub.s32 %s17, %s24
    %p82 = scmp.eq.s32.totalorder %s81, 0
    %s84 = sadd.s32 %s83, 1
    %s85 = scalar_select %p82, %s83, %s84
    %p88 = pneg %p82
    %p89 = scmp.eq.s32.totalorder %s9, 1
    %p90 = por %p88, %p89
    %p91 = scmp.ne.s32.totalorder %s83, %s86
    %p92 = scmp.eq.s32.totalorder %s9, 0
    %p93 = por %p91, %p92
    %p94 = scmp.ne.s32.totalorder %s83, %s86
    %p95 = scmp.eq.s32.totalorder %s14, 1
    %p96 = por %p94, %p95
    %p97 = scmp.ne.s32.totalorder %s86, %s87
    %p98 = scmp.eq.s32.totalorder %s14, 0
    %p99 = por %p97, %p98
    %p100 = scmp.ne.s32.totalorder %s86, %s87
    %p101 = scmp.eq.s32.totalorder %s15, 1
    %p102 = por %p100, %p101
    %p104 = scmp.ne.s32.totalorder %s87, %s103
    %p105 = scmp.eq.s32.totalorder %s15, 0
    %p106 = por %p104, %p105
    %s107 = ssub.s32 %s16, %s28
    %s108 = ssub.s32 %s17, %s24
    %s109 = sor.u32 %s107, %s108
    %p110 = scmp.eq.s32.totalorder %s109, 0
    %s112 = sadd.s32 %s111, 1
    %s113 = scalar_select %p110, %s111, %s112
    %p116 = pneg %p110
    %p117 = scmp.eq.s32.totalorder %s9, 1
    %p118 = por %p116, %p117
    %p119 = scmp.ne.s32.totalorder %s111, %s114
    %p120 = scmp.eq.s32.totalorder %s9, 0
    %p121 = por %p119, %p120
    %p122 = scmp.ne.s32.totalorder %s111, %s114
    %p123 = scmp.eq.s32.totalorder %s14, 1
    %p124 = por %p122, %p123
    %p125 = scmp.ne.s32.totalorder %s114, %s115
    %p126 = scmp.eq.s32.totalorder %s14, 0
    %p127 = por %p125, %p126
    %p128 = scmp.ne.s32.totalorder %s114, %s115
    %p129 = scmp.eq.s32.totalorder %s15, 1
    %p130 = por %p128, %p129
    %p132 = scmp.ne.s32.totalorder %s115, %s131
    %p133 = scmp.eq.s32.totalorder %s15, 0
    %p134 = por %p132, %p133
    %p135 = scmp.le.s32.totalorder 1, %s9
    %p136 = scmp.lt.s32.totalorder %s9, 3
    %p137 = pnand %p135, %p136
    %p138 = pneg %p137
    // Predicated region
    $region9: #{patch_embedding_block.1} parent=5 // pred_check
      _
    $region10: #{patch_embedding_block.1} parent=5 // pred_check_branch
      %140 = sbr.rel (%p137) target = $region12
    $region11: #{patch_embedding_block.1} parent=5 // pred_region
      %s141 = ssub.s32 %s9, 1
      // Predicated region
      $region13: #{patch_embedding_block.1} parent=11 // pred_check
        %p142 = pneg %p73
      $region14: #{patch_embedding_block.1} parent=11 // pred_check_branch
        %144 = sbr.rel (%p142) target = $region16
      $region15: #{patch_embedding_block.1} parent=11 // pred_region
        %p145 = scmp.lt.s32.totalorder %s19, 0
        %s146 = scalar_select %p145, %s19, 0
        %s147 = smul.addr %s146, 4
        %s148 = scalar_lea.vmem %s1, %s147
      $region16: #{patch_embedding_block.1} parent=11 // pred_fallthru
        _
      // Predicated region
      $region17: #{patch_embedding_block.1} parent=11 // pred_check
        %p149 = pneg %p99
      $region18: #{patch_embedding_block.1} parent=11 // pred_check_branch
        %151 = sbr.rel (%p149) target = $region20
      $region19: #{patch_embedding_block.1} parent=11 // pred_region
        %p152 = scmp.lt.s32.totalorder %s19, 0
        %s153 = scalar_select %p152, %s19, 0
        %s154 = smul.addr %s153, 8
        %s155 = scalar_lea.vmem %s2, %s154
      $region20: #{patch_embedding_block.1} parent=11 // pred_fallthru
        _
    $region12: #{patch_embedding_block.1} parent=5 // pred_fallthru
      _
    %p156 = scmp.lt.s32.totalorder %s9, 2
    // Predicated region
    $region21: #{patch_embedding_block.1} parent=5 // pred_check
      %p157 = pneg %p156
    $region22: #{patch_embedding_block.1} parent=5 // pred_check_branch
      %159 = sbr.rel (%p157) target = $region24
    $region23: #{patch_embedding_block.1} parent=5 // pred_region
      // Predicated region
      $region25: #{patch_embedding_block.1} parent=23 // pred_check
        %p160 = pneg %p41
      $region26: #{patch_embedding_block.1} parent=23 // pred_check_branch
        %162 = sbr.rel (%p160) target = $region28
      $region27: #{patch_embedding_block.1} parent=23 // pred_region
        %s163 = smul.u32 8, %s16
        %p164 = scmp.lt.s32.totalorder %s163, 15
        %s165 = scalar_select %p164, %s163, 15
        %s166 = smul.addr %s165, 2
        %s167 = smul.addr %s166, 4
        %s168 = scalar_lea.vmem %s0, %s167
        %s169 = smul.u32 8, %s16
      $region28: #{patch_embedding_block.1} parent=23 // pred_fallthru
        _
    $region24: #{patch_embedding_block.1} parent=5 // pred_fallthru
      _
    %p170 = scmp.le.s32.totalorder 1, %s9
    %p171 = scmp.lt.s32.totalorder %s9, 3
    %p172 = pnand %p170, %p171
    %p173 = pneg %p172
    // Predicated region
    $region29: #{patch_embedding_block.1} parent=5 // pred_check
      _
    $region30: #{patch_embedding_block.1} parent=5 // pred_check_branch
      %175 = sbr.rel (%p172) target = $region32
    $region31: #{patch_embedding_block.1} parent=5 // pred_region
      %s176 = ssub.s32 %s9, 1
      %s177 = smul.u32 8, %s18
      %p178 = scmp.lt.s32.totalorder %s177, 15
      %s179 = scalar_select %p178, %s177, 15
      %s180 = smul.addr %s179, 2
      %s181 = smul.addr %s180, 4
      %s182 = scalar_lea.vmem %s0, %s181
      %p183 = pneg %p47
      %p184 = pneg %p44
      %p185 = scmp.lt.s32.totalorder %s19, 0
      %s186 = scalar_select %p185, %s19, 0
      %s187 = smul.addr %s186, 4
      %s188 = scalar_lea.vmem %s1, %s187
      %p189 = pneg %p73
      %p190 = pneg %p70
      %p191 = scmp.lt.s32.totalorder %s19, 0
      %s192 = scalar_select %p191, %s19, 0
      %s193 = smul.addr %s192, 8
      %s194 = scalar_lea.vmem %s2, %s193
      %p195 = pneg %p99
      %p196 = pneg %p96
      %p197 = pneg %p127
      %p198 = pneg %p124
      %s199 = smul.u32 8, %s18
      %p200 = scmp.lt.s32.totalorder %s199, 15
      %s201 = scalar_select %p200, %s199, 15
      %p202 = scmp.lt.s32.totalorder %s19, 0
      %s203 = scalar_select %p202, %s19, 0
      %s204 = sadd.s32 %s203, %s201
      %s205 = smul.addr %s204, 8
      %s206 = scalar_lea.vmem %s3, %s205
      %s207 = smul.u32 8, %s18
      %p208 = scmp.lt.s32.totalorder %s207, 15
      %s209 = scalar_select %p208, %s207, 15
      %s210 = smul.addr %s209, 2
      %s211 = smul.addr %s210, 4
      %s212 = scalar_lea.vmem %s0, %s211
      %s213 = smul.u32 8, %s18
      %p214 = scmp.lt.s32.totalorder %s19, 0
      %s215 = scalar_select %p214, %s19, 0
      %s216 = smul.addr %s215, 4
      %s217 = scalar_lea.vmem %s1, %s216
      %p218 = scmp.lt.s32.totalorder %s19, 0
      %s219 = scalar_select %p218, %s19, 0
      %s220 = smul.addr %s219, 8
      %s221 = scalar_lea.vmem %s2, %s220
      %s222 = smul.u32 8, %s18
      %p223 = scmp.lt.s32.totalorder %s222, 15
      %s224 = scalar_select %p223, %s222, 15
      %p225 = scmp.lt.s32.totalorder %s19, 0
      %s226 = scalar_select %p225, %s19, 0
      %s227 = sadd.s32 %s226, %s224
      %s228 = smul.addr %s227, 8
      %s229 = scalar_lea.vmem %s3, %s228
      %s230 = smul.u32 8, %s18
      %v232 = vld [vmem:[%s212] sm:$0xff]
      %v233 = vld [vmem:[%s212 + $0x8] sm:$0xff]
      %v234 = vld [vmem:[%s212 + $0x10] sm:$0xff]
      %v235 = vld [vmem:[%s212 + $0x18] sm:$0xff]
      %v236 = vld [vmem:[%s212 + $0x20] sm:$0xff]
      %v237 = vld [vmem:[%s212 + $0x28] sm:$0xff]
      %v238 = vld [vmem:[%s212 + $0x30] sm:$0xff]
      %v239 = vld [vmem:[%s212 + $0x38] sm:$0xff]
      %v240 = vld [vmem:[%s217] sm:$0xf]
      %v241 = vld [vmem:[%s217 + $0x4] sm:$0xf]
      %v242 = vld [vmem:[%s217 + $0x8] sm:$0xf]
      %v243 = vld [vmem:[%s217 + $0xc] sm:$0xf]
      %v244 = vld [vmem:[%s217 + $0x10] sm:$0xf]
      %v245 = vld [vmem:[%s217 + $0x14] sm:$0xf]
      %v246 = vld [vmem:[%s217 + $0x18] sm:$0xf]
      %v247 = vld [vmem:[%s217 + $0x1c] sm:$0xf]
      %v248 = vld [vmem:[%s217 + $0x20] sm:$0xf]
      %v249 = vld [vmem:[%s217 + $0x24] sm:$0xf]
      %v250 = vld [vmem:[%s217 + $0x28] sm:$0xf]
      %v251 = vld [vmem:[%s217 + $0x2c] sm:$0xf]
      %v252 = vld [vmem:[%s217 + $0x30] sm:$0xf]
      %v253 = vld [vmem:[%s217 + $0x34] sm:$0xf]
      %v254 = vld [vmem:[%s217 + $0x38] sm:$0xf]
      %v255 = vld [vmem:[%s217 + $0x3c] sm:$0xf]
      %v256 = vld [vmem:[%s217 + $0x40] sm:$0xf]
      %v257 = vld [vmem:[%s217 + $0x44] sm:$0xf]
      %v258 = vld [vmem:[%s217 + $0x48] sm:$0xf]
      %v259 = vld [vmem:[%s217 + $0x4c] sm:$0xf]
      %v260 = vld [vmem:[%s217 + $0x50] sm:$0xf]
      %v261 = vld [vmem:[%s217 + $0x54] sm:$0xf]
      %v262 = vld [vmem:[%s217 + $0x58] sm:$0xf]
      %v263 = vld [vmem:[%s217 + $0x5c] sm:$0xf]
      %v264 = vld [vmem:[%s217 + $0x60] sm:$0xf]
      %v265 = vld [vmem:[%s217 + $0x64] sm:$0xf]
      %v266 = vld [vmem:[%s217 + $0x68] sm:$0xf]
      %v267 = vld [vmem:[%s217 + $0x6c] sm:$0xf]
      %v268 = vld [vmem:[%s217 + $0x70] sm:$0xf]
      %v269 = vld [vmem:[%s217 + $0x74] sm:$0xf]
      %v270 = vld [vmem:[%s217 + $0x78] sm:$0xf]
      %v271 = vld [vmem:[%s217 + $0x7c] sm:$0xf]
      %v272 = vld [vmem:[%s221] sm:$0xff]
      %v273 = vld [vmem:[%s221 + $0x8] sm:$0xff]
      %v274 = vld [vmem:[%s221 + $0x10] sm:$0xff]
      %v275 = vld [vmem:[%s221 + $0x18] sm:$0xff]
      %v276 = vld [vmem:[%s221 + $0x20] sm:$0xff]
      %v277 = vld [vmem:[%s221 + $0x28] sm:$0xff]
      %v278 = vld [vmem:[%s221 + $0x30] sm:$0xff]
      %v279 = vld [vmem:[%s221 + $0x38] sm:$0xff]
      %v288 = vunpack.c.l.b16 %v232
      %v289 = vunpack.c.h.b16 %v232
      %v290 = vunpack.c.l.b16 %v233
      %v291 = vunpack.c.h.b16 %v233
      %v292 = vunpack.c.l.b16 %v234
      %v293 = vunpack.c.h.b16 %v234
      %v294 = vunpack.c.l.b16 %v235
      %v295 = vunpack.c.h.b16 %v235
      %v296 = vunpack.c.l.b16 %v236
      %v297 = vunpack.c.h.b16 %v236
      %v298 = vunpack.c.l.b16 %v237
      %v299 = vunpack.c.h.b16 %v237
      %v300 = vunpack.c.l.b16 %v238
      %v301 = vunpack.c.h.b16 %v238
      %v302 = vunpack.c.l.b16 %v239
      %v303 = vunpack.c.h.b16 %v239
      %v304 = vpack.c.b16 %v290, %v288
      %v305 = vpack.c.b16 %v291, %v289
      %v306 = vpack.c.b16 %v294, %v292
      %v307 = vpack.c.b16 %v295, %v293
      %v308 = vpack.c.b16 %v298, %v296
      %v309 = vpack.c.b16 %v299, %v297
      %v310 = vpack.c.b16 %v302, %v300
      %v311 = vpack.c.b16 %v303, %v301
      %v352 = vunpack.c.l.b16 %v240
      %v353 = vunpack.c.l.b16 %v241
      %v354 = vunpack.c.l.b16 %v242
      %v355 = vunpack.c.l.b16 %v243
      %v356 = vunpack.c.l.b16 %v244
      %v357 = vunpack.c.l.b16 %v245
      %v358 = vunpack.c.l.b16 %v246
      %v359 = vunpack.c.l.b16 %v247
      %v360 = vunpack.c.l.b16 %v248
      %v361 = vunpack.c.l.b16 %v249
      %v362 = vunpack.c.l.b16 %v250
      %v363 = vunpack.c.l.b16 %v251
      %v364 = vunpack.c.l.b16 %v252
      %v365 = vunpack.c.l.b16 %v253
      %v366 = vunpack.c.l.b16 %v254
      %v367 = vunpack.c.l.b16 %v255
      %v368 = vunpack.c.l.b16 %v256
      %v369 = vunpack.c.l.b16 %v257
      %v370 = vunpack.c.l.b16 %v258
      %v371 = vunpack.c.l.b16 %v259
      %v372 = vunpack.c.l.b16 %v260
      %v373 = vunpack.c.l.b16 %v261
      %v374 = vunpack.c.l.b16 %v262
      %v375 = vunpack.c.l.b16 %v263
      %v376 = vunpack.c.l.b16 %v264
      %v377 = vunpack.c.l.b16 %v265
      %v378 = vunpack.c.l.b16 %v266
      %v379 = vunpack.c.l.b16 %v267
      %v380 = vunpack.c.l.b16 %v268
      %v381 = vunpack.c.l.b16 %v269
      %v382 = vunpack.c.l.b16 %v270
      %v383 = vunpack.c.l.b16 %v271
      %v384 = vpack.c.b16 %v353, %v352
      %v385 = vpack.c.b16 %v355, %v354
      %v386 = vpack.c.b16 %v357, %v356
      %v387 = vpack.c.b16 %v359, %v358
      %v388 = vpack.c.b16 %v361, %v360
      %v389 = vpack.c.b16 %v363, %v362
      %v390 = vpack.c.b16 %v365, %v364
      %v391 = vpack.c.b16 %v367, %v366
      %v392 = vpack.c.b16 %v369, %v368
      %v393 = vpack.c.b16 %v371, %v370
      %v394 = vpack.c.b16 %v373, %v372
      %v395 = vpack.c.b16 %v375, %v374
      %v396 = vpack.c.b16 %v377, %v376
      %v397 = vpack.c.b16 %v379, %v378
      %v398 = vpack.c.b16 %v381, %v380
      %v399 = vpack.c.b16 %v383, %v382
      %416 = vmatprep.subr.bf16.mxu0 0
      %417 = vmatpush1.bf16.msra.mxu0 %v384
      %418 = vmatprep.subr.bf16.mxu0 0
      %419 = vmatpush1.bf16.msra.mxu0 %v385
      %420 = vmatprep.subr.bf16.mxu0 0
      %421 = vmatpush1.bf16.msra.mxu0 %v386
      %422 = vmatprep.subr.bf16.mxu0 0
      %423 = vmatpush1.bf16.msra.mxu0 %v387
      %424 = vmatprep.subr.bf16.mxu0 0
      %425 = vmatpush1.bf16.msra.mxu0 %v388
      %426 = vmatprep.subr.bf16.mxu0 0
      %427 = vmatpush1.bf16.msra.mxu0 %v389
      %428 = vmatprep.subr.bf16.mxu0 0
      %429 = vmatpush1.bf16.msra.mxu0 %v390
      %430 = vmatprep.subr.bf16.mxu0 0
      %431 = vmatpush1.bf16.msra.mxu0 %v391
      %432 = vmatprep.subr.bf16.mxu0 0
      %433 = vmatpush1.bf16.msra.mxu0 %v392
      %434 = vmatprep.subr.bf16.mxu0 0
      %435 = vmatpush1.bf16.msra.mxu0 %v393
      %436 = vmatprep.subr.bf16.mxu0 0
      %437 = vmatpush1.bf16.msra.mxu0 %v394
      %438 = vmatprep.subr.bf16.mxu0 0
      %439 = vmatpush1.bf16.msra.mxu0 %v395
      %440 = vmatprep.subr.bf16.mxu0 0
      %441 = vmatpush1.bf16.msra.mxu0 %v396
      %442 = vmatprep.subr.bf16.mxu0 0
      %443 = vmatpush1.bf16.msra.mxu0 %v397
      %444 = vmatprep.subr.bf16.mxu0 0
      %445 = vmatpush1.bf16.msra.mxu0 %v398
      %446 = vmatprep.subr.bf16.mxu0 0
      %447 = vmatpush1.bf16.msra.mxu0 %v399
      %448 = vmatprep.mubr.bf16.mxu0 %v305
      %449 = vmatmul.mubr.bf16.gmra.mrb[0].mxu0 %v304
      %v450 = vpop.f32.mrb[0].mxu0
      %v451 = vadd.f32 %v272, %v450
      %v452 = vpop.f32.mrb[0].mxu0
      %v453 = vpop.f32.mrb[0].mxu0
      %v454 = vadd.f32 %v273, %v453
      %v455 = vpop.f32.mrb[0].mxu0
      %456 = vmatprep.mubr.bf16.mxu0 %v307
      %457 = vmatmul.mubr.bf16.gmra.mrb[0].mxu0 %v306
      %v458 = vpop.f32.mrb[0].mxu0
      %v459 = vadd.f32 %v274, %v458
      %v460 = vpop.f32.mrb[0].mxu0
      %v461 = vpop.f32.mrb[0].mxu0
      %v462 = vadd.f32 %v275, %v461
      %v463 = vpop.f32.mrb[0].mxu0
      %464 = vmatprep.mubr.bf16.mxu0 %v309
      %465 = vmatmul.mubr.bf16.gmra.mrb[0].mxu0 %v308
      %v466 = vpop.f32.mrb[0].mxu0
      %v467 = vadd.f32 %v276, %v466
      %v468 = vpop.f32.mrb[0].mxu0
      %v469 = vpop.f32.mrb[0].mxu0
      %v470 = vadd.f32 %v277, %v469
      %v471 = vpop.f32.mrb[0].mxu0
      %472 = vmatprep.mubr.bf16.mxu0 %v311
      %473 = vmatmul.mubr.bf16.gmra.mrb[0].mxu0 %v310
      %v474 = vpop.f32.mrb[0].mxu0
      %v475 = vadd.f32 %v278, %v474
      %v476 = vpop.f32.mrb[0].mxu0
      %v477 = vpop.f32.mrb[0].mxu0
      %v478 = vadd.f32 %v279, %v477
      %v479 = vpop.f32.mrb[0].mxu0
      %480 = vdwg.mxu0
      %481 = vst [vmem:[%s229] sm:$0xff] %v451
      %482 = vst [vmem:[%s229 + $0x8] sm:$0xff] %v454
      %483 = vst [vmem:[%s229 + $0x10] sm:$0xff] %v459
      %484 = vst [vmem:[%s229 + $0x18] sm:$0xff] %v462
      %485 = vst [vmem:[%s229 + $0x20] sm:$0xff] %v467
      %486 = vst [vmem:[%s229 + $0x28] sm:$0xff] %v470
      %487 = vst [vmem:[%s229 + $0x30] sm:$0xff] %v475
      %488 = vst [vmem:[%s229 + $0x38] sm:$0xff] %v478
      %s489 = smul.u32 8, %s18
      %p490 = scmp.lt.s32.totalorder %s489, 15
      %s491 = scalar_select %p490, %s489, 15
      %p492 = scmp.lt.s32.totalorder %s19, 0
      %s493 = scalar_select %p492, %s19, 0
      %s494 = sadd.s32 %s493, %s491
      %s495 = smul.addr %s494, 8
      %s496 = scalar_lea.vmem %s3, %s495
      // Predicated region
      $region33: #{patch_embedding_block.1} parent=31 // pred_check
        %p497 = pneg %p124
      $region34: #{patch_embedding_block.1} parent=31 // pred_check_branch
        %499 = sbr.rel (%p497) target = $region36
      $region35: #{patch_embedding_block.1} parent=31 // pred_region
        %s500 = smul.u32 8, %s18
      $region36: #{patch_embedding_block.1} parent=31 // pred_fallthru
        _
    $region32: #{patch_embedding_block.1} parent=5 // pred_fallthru
      _
    %p501 = scmp.le.s32.totalorder 2, %s9
    // Predicated region
    $region37: #{patch_embedding_block.1} parent=5 // pred_check
      %p502 = pneg %p501
    $region38: #{patch_embedding_block.1} parent=5 // pred_check_branch
      %504 = sbr.rel (%p502) target = $region40
    $region39: #{patch_embedding_block.1} parent=5 // pred_region
      %s505 = ssub.s32 %s9, 2
      // Predicated region
      $region41: #{patch_embedding_block.1} parent=39 // pred_check
        %p506 = pneg %p130
      $region42: #{patch_embedding_block.1} parent=39 // pred_check_branch
        %508 = sbr.rel (%p506) target = $region44
      $region43: #{patch_embedding_block.1} parent=39 // pred_region
        %s509 = smul.u32 8, %s20
        %p510 = scmp.lt.s32.totalorder %s509, 15
        %s511 = scalar_select %p510, %s509, 15
        %p512 = scmp.lt.s32.totalorder %s21, 0
        %s513 = scalar_select %p512, %s21, 0
        %s514 = sadd.s32 %s513, %s511
        %s515 = smul.addr %s514, 8
        %s516 = scalar_lea.vmem %s3, %s515
      $region44: #{patch_embedding_block.1} parent=39 // pred_fallthru
        _
    $region40: #{patch_embedding_block.1} parent=5 // pred_fallthru
      _
  $region6: #{patch_embedding_block.1} parent=0 // loop_footer
    %s13 = sadd.s32 1, %s9
  $region7: #{patch_embedding_block.1} parent=0 // loop_footer_branch
    %8 = sbr.rel target = $region3
  $region8: #{patch_embedding_block.1} parent=0 // loop_exit
    _

</llo_original>
